<compile_context>
chip_gen: v7x
topology: tpu7x:2x2x1
jax: 0.10.0
libtpu: 0.0.40
codegen_flags: <defaults>
</compile_context>

<pallas_src>
import functools

import jax
import jax.numpy as jnp
from jax.experimental import pallas as pl
from jax.experimental.pallas import tpu as pltpu


def _bow_kernel(x_ref, w_ref, b_ref, o_ref, acc_ref, *, v_total, tk,
                compute_dtype):
    """One (batch-tile, K-tile) step: acc += W_k @ X_k^T; finalize on last k."""
    k = pl.program_id(1)

    @pl.when(k == 0)
    def _():
        acc_ref[...] = jnp.zeros_like(acc_ref)

    x = x_ref[...]                       # (TB, TK) stored dtype (e.g. f32)
    w = w_ref[...]                       # (L,  TK) compute dtype (e.g. bf16)
    if v_total % tk != 0:
        # Zero the padded tail of the last K tile (both operands, so stale
        # NaN/Inf VMEM contents can't pollute the accumulation). VPU is idle,
        # so this is free.
        col = jax.lax.broadcasted_iota(jnp.int32, (1, tk), 1) + k * tk
        valid = col < v_total
        x = jnp.where(valid, x, 0)
        w = jnp.where(valid, w, 0)
    # In-kernel cast of the streamed operand (no wrapper convert pass).
    x = x.astype(compute_dtype)

    # (L, TB) += W_tile @ X_tile^T, accumulated in f32 on the MXU.
    acc_ref[...] += jax.lax.dot_general(
        w, x, (((1,), (1,)), ((), ())),
        preferred_element_type=jnp.float32)

    @pl.when(k == pl.num_programs(1) - 1)
    def _():
        logits = acc_ref[...] + b_ref[...]          # (L, TB) f32
        # Numerically stable log_softmax over the language axis (sublanes).
        m = jnp.max(logits, axis=0, keepdims=True)  # (1, TB)
        shifted = logits - m
        lse = jnp.log(jnp.sum(jnp.exp(shifted), axis=0, keepdims=True))
        o_ref[...] = (shifted - lse).astype(o_ref.dtype)


def _vmem_capacity_bytes():
    try:
        return int(pltpu.get_tpu_info().vmem_capacity_bytes)
    except Exception:
        return 64 * 1024 * 1024   # conservative (v7x-sized) fallback


def _tile_footprint(tb, tk, L, x_itemsize, w_itemsize):
    """VMEM bytes for one grid step: 2x x-tile, 2x w-tile, 2x out-tile,
    1x f32 accumulator, bias + slack."""
    return (2 * tb * tk * x_itemsize
            + 2 * L * tk * w_itemsize
            + 2 * L * tb * 4
            + L * tb * 4
            + 4096)


def _pick_tiles(B, V, L, x_itemsize, w_itemsize, budget_bytes):
    """Pick (TB, TK). Prefer a single full-V K tile with the largest batch tile
    the budget allows (no artificial cap); for very large vocabularies keep the
    batch tile lane-dense (>= 512 if possible) and tile over V instead."""
    def round_b(tb):
        return B if tb >= B else max(128, (tb // 128) * 128)

    def round_k(tk):
        return V if tk >= V else max(128, (tk // 128) * 128)

    # 1) Full vocabulary in one K tile; grow TB to the budget (capped at B).
    per_row = 2 * V * x_itemsize + 3 * L * 4
    avail = budget_bytes - 2 * L * V * w_itemsize - 4096
    if avail >= per_row * min(B, 128):
        tb = round_b(avail // per_row)
        if _tile_footprint(tb, V, L, x_itemsize, w_itemsize) <= budget_bytes:
            return tb, V

    # 2) Large vocab: keep TB lane-dense and tile over V (f32 accumulator path).
    for tb in (1024, 512, 256, 128):
        tb = min(tb, B)
        per_col = 2 * tb * x_itemsize + 2 * L * w_itemsize
        avail = budget_bytes - 3 * L * tb * 4 - 4096
        if avail >= per_col * 128:
            tk = round_k(avail // per_col)
            if _tile_footprint(tb, tk, L, x_itemsize, w_itemsize) <= budget_bytes:
                return tb, tk
        if tb == B:
            break

    # 3) Last resort: minimum legal tiles.
    return min(B, 128), min(V, 128)


def modelo_bow_forward(bow_vec, weight, bias, *, block_b=None, block_v=None,
                       compute_dtype=jnp.bfloat16, vmem_budget_bytes=None):
    """log_softmax(bow_vec @ weight.T + bias, axis=1) -> (B, L) float32.

    bow_vec: (B, V); weight: (L, V) (torch nn.Linear layout); bias: (L,).
    Optional block_b / block_v overrides must be multiples of 128 (or the full
    extent).
    """
    B, V = bow_vec.shape
    L, Vw = weight.shape
    assert V == Vw and bias.shape == (L,)

    # Generation-aware VMEM budget (~75% of physical).
    capacity = _vmem_capacity_bytes()
    if vmem_budget_bytes is None:
        vmem_budget_bytes = (capacity * 3) // 4

    # Only the tiny weight/bias are converted in the wrapper; the dominant
    # (B, V) operand streams as stored and is cast inside the kernel.
    w = weight.astype(compute_dtype)
    b2 = bias.astype(jnp.float32).reshape(L, 1)

    x_itemsize = jnp.dtype(bow_vec.dtype).itemsize
    w_itemsize = jnp.dtype(compute_dtype).itemsize
    TB, TK = _pick_tiles(B, V, L, x_itemsize, w_itemsize, vmem_budget_bytes)
    if block_b is not None:
        TB = min(block_b, B)
    if block_v is not None:
        TK = min(block_v, V)
    grid = (pl.cdiv(B, TB), pl.cdiv(V, TK))

    # Compiler VMEM limit tied to the actual footprint (with headroom), not a
    # hardcoded constant decoupled from the budget.
    footprint = _tile_footprint(TB, TK, L, x_itemsize, w_itemsize)
    vmem_limit = int(min(max(footprint + (4 << 20), 32 << 20),
                         capacity - (8 << 20)))

    cost = pl.CostEstimate(
        flops=2 * B * V * L,
        transcendentals=B * L,
        bytes_accessed=(B * V * x_itemsize + L * V * w_itemsize
                        + L * 4 + B * L * 4))

    kernel = functools.partial(_bow_kernel, v_total=V, tk=TK,
                               compute_dtype=compute_dtype)

    out_t = pl.pallas_call(
        kernel,
        out_shape=jax.ShapeDtypeStruct((L, B), jnp.float32),
        grid_spec=pltpu.PrefetchScalarGridSpec(
            num_scalar_prefetch=0,
            grid=grid,
            in_specs=[
                # bow_vec tiles stream over (batch, vocab) - auto double-buffered.
                pl.BlockSpec((TB, TK), lambda i, k: (i, k)),
                # weight tiles stream over vocab only (resident across batch).
                pl.BlockSpec((L, TK), lambda i, k: (0, k)),
                # bias: constant block -> VMEM-resident.
                pl.BlockSpec((L, 1), lambda i, k: (0, 0)),
            ],
            # Output kept transposed (L, B); constant across k -> accumulator
            # pattern with a single HBM writeback per batch tile.
            out_specs=pl.BlockSpec((L, TB), lambda i, k: (0, i)),
            scratch_shapes=[pltpu.VMEM((L, TB), jnp.float32)],
        ),
        compiler_params=pltpu.CompilerParams(
            dimension_semantics=("parallel", "arbitrary"),
            vmem_limit_bytes=vmem_limit,
        ),
        cost_estimate=cost,
    )(bow_vec, w, b2)

    # Tiny (L, B) -> (B, L) transpose in XLA; negligible next to the (B, V)
    # stream.  (Consumers that can take (L, B), or only need argmax, could skip
    # this entirely.)
    return out_t.T


if __name__ == "__main__":
    # Small shapes consistent with the module: one BOW vector per sample over
    # the corpus vocabulary, classified into a handful of languages.
    batch = 256
    tamanho_do_corpus = 512   # vocabulary size (nn.Linear in_features)
    lista_idiomas = 8         # number of languages (nn.Linear out_features)

    key = jax.random.PRNGKey(0)
    k_w, k_b, k_x = jax.random.split(key, 3)

    # nn.Linear-style init: U(-1/sqrt(fan_in), 1/sqrt(fan_in)); weight is (out, in).
    bound = 1.0 / jnp.sqrt(float(tamanho_do_corpus))
    weight = jax.random.uniform(
        k_w, (lista_idiomas, tamanho_do_corpus), jnp.float32, -bound, bound)
    bias = jax.random.uniform(
        k_b, (lista_idiomas,), jnp.float32, -bound, bound)

    # Synthetic BOW counts (small non-negative integers -> exact in bf16).
    bow_vec = jax.random.randint(
        k_x, (batch, tamanho_do_corpus), 0, 4).astype(jnp.float32)

    # 1) Auto-picked tiles (single K tile, large batch tile).
    out = jax.block_until_ready(modelo_bow_forward(bow_vec, weight, bias))
    assert out.shape == (batch, lista_idiomas)

    # 2) Force the tiled path: 2 batch tiles x 2 K tiles (with a padded last
    #    K tile) to exercise the accumulator / masking logic.
    out_tiled = jax.block_until_ready(
        modelo_bow_forward(bow_vec, weight, bias, block_b=128, block_v=384))
    assert out_tiled.shape == (batch, lista_idiomas)
    assert jnp.allclose(out, out_tiled, atol=2e-3, rtol=2e-3), \
        float(jnp.max(jnp.abs(out - out_tiled)))

    # Reference with the same bf16 rounding of input/weight the kernel uses.
    xb = bow_vec.astype(jnp.bfloat16).astype(jnp.float32)
    wb = weight.astype(jnp.bfloat16).astype(jnp.float32)
    ref_bf16 = jax.nn.log_softmax(xb @ wb.T + bias[None, :], axis=1)
    assert jnp.allclose(out, ref_bf16, atol=2e-3, rtol=2e-3), \
        float(jnp.max(jnp.abs(out - ref_bf16)))

    # Full-f32 torch semantics; only bf16 rounding separates us.
    ref_f32 = jax.nn.log_softmax(bow_vec @ weight.T + bias[None, :], axis=1)
    assert jnp.allclose(out, ref_f32, atol=5e-2), \
        float(jnp.max(jnp.abs(out - ref_f32)))

    print("KERNEL_OK")
</pallas_src>

<mosaic_0001>
module attributes {stable_mosaic.version = 11 : i64} {
  func.func @_bow_kernel(%arg0: i32, %arg1: i32, %arg2: memref<256x512xf32, #tpu.memory_space<vmem>>, %arg3: memref<8x512xbf16, #tpu.memory_space<vmem>>, %arg4: memref<8x1xf32, #tpu.memory_space<vmem>>, %arg5: memref<8x256xf32, #tpu.memory_space<vmem>>, %arg6: memref<8x256xf32, #tpu.memory_space<vmem>>) attributes {dimension_semantics = [#tpu.dimension_semantics<parallel>, #tpu.dimension_semantics<arbitrary>], iteration_bounds = array<i64: 1, 1>, scalar_prefetch = 0 : i64, scratch_operands = 1 : i64, tpu.core_type = #tpu.core_type<tc>, window_params = [{transform_indices = @transform_0, window_bounds = array<i64: 256, 512>}, {transform_indices = @transform_1, window_bounds = array<i64: 8, 512>}, {pipeline_mode = #tpu.pipeline_mode<synchronous>, transform_indices = @transform_2, window_bounds = array<i64: 8, 1>}, {transform_indices = @transform_3, window_bounds = array<i64: 8, 256>}]} {
    %c0_i32 = arith.constant 0 : i32
    %0 = arith.cmpi eq, %arg1, %c0_i32 : i32
    %1 = arith.extui %0 : i1 to i32
    %c0_i32_0 = arith.constant 0 : i32
    %2 = arith.cmpi ne, %1, %c0_i32_0 : i32
    scf.if %2 {
      %cst_10 = arith.constant 0.000000e+00 : f32
      %13 = vector.broadcast %cst_10 : f32 to vector<8x256xf32>
      %c0_11 = arith.constant 0 : index
      %c0_12 = arith.constant 0 : index
      %14 = vector.load %arg6[%c0_11, %c0_12] : memref<8x256xf32, #tpu.memory_space<vmem>>, vector<8x256xf32>
      tpu.vector_store %arg6[%c0_11, %c0_12], %13 {strides = array<i32>} : memref<8x256xf32, #tpu.memory_space<vmem>>, vector<8x256xf32>,
    } else {
    }
    %c0 = arith.constant 0 : index
    %c0_1 = arith.constant 0 : index
    %3 = vector.load %arg2[%c0, %c0_1] : memref<256x512xf32, #tpu.memory_space<vmem>>, vector<256x512xf32>
    %c0_2 = arith.constant 0 : index
    %c0_3 = arith.constant 0 : index
    %4 = vector.load %arg3[%c0_2, %c0_3] : memref<8x512xbf16, #tpu.memory_space<vmem>>, vector<8x512xbf16>
    %5 = arith.truncf %3 : vector<256x512xf32> to vector<256x512xbf16>
    %c0_4 = arith.constant 0 : index
    %c0_5 = arith.constant 0 : index
    %6 = vector.load %arg6[%c0_4, %c0_5] : memref<8x256xf32, #tpu.memory_space<vmem>>, vector<8x256xf32>
    %cst = arith.constant dense<0.000000e+00> : vector<8x256xf32>
    %7 = tpu.matmul %4, %5, %cst {dimension_numbers = #tpu.dot_dimension_numbers<[1], [1], [0], [0], [0, 0, 1, 0], [], []>} : vector<8x512xbf16>, vector<256x512xbf16>, vector<8x256xf32> -> vector<8x256xf32>
    %8 = arith.addf %6, %7 : vector<8x256xf32>
    %c0_6 = arith.constant 0 : index
    %c0_7 = arith.constant 0 : index
    %9 = vector.load %arg6[%c0_6, %c0_7] : memref<8x256xf32, #tpu.memory_space<vmem>>, vector<8x256xf32>
    tpu.vector_store %arg6[%c0_6, %c0_7], %8 {strides = array<i32>} : memref<8x256xf32, #tpu.memory_space<vmem>>, vector<8x256xf32>,
    %c0_i32_8 = arith.constant 0 : i32
    %10 = arith.cmpi eq, %arg1, %c0_i32_8 : i32
    %11 = arith.extui %10 : i1 to i32
    %c0_i32_9 = arith.constant 0 : i32
    %12 = arith.cmpi ne, %11, %c0_i32_9 : i32
    scf.if %12 {
      %c0_10 = arith.constant 0 : index
      %c0_11 = arith.constant 0 : index
      %13 = vector.load %arg6[%c0_10, %c0_11] : memref<8x256xf32, #tpu.memory_space<vmem>>, vector<8x256xf32>
      %c0_12 = arith.constant 0 : index
      %c0_13 = arith.constant 0 : index
      %14 = vector.load %arg4[%c0_12, %c0_13] : memref<8x1xf32, #tpu.memory_space<vmem>>, vector<8x1xf32>
      %15 = vector.broadcast %14 : vector<8x1xf32> to vector<8x256xf32>
      %16 = arith.addf %13, %15 : vector<8x256xf32>
      %cst_14 = arith.constant dense<0xFF800000> : vector<256xf32>
      %17 = vector.multi_reduction <maximumf>, %16, %cst_14 [0] : vector<8x256xf32> to vector<256xf32>
      %18 = vector.shape_cast %17 : vector<256xf32> to vector<1x256xf32>
      %19 = vector.broadcast %18 : vector<1x256xf32> to vector<8x256xf32>
      %20 = arith.subf %16, %19 : vector<8x256xf32>
      %21 = math.exp %20 : vector<8x256xf32>
      %cst_15 = arith.constant dense<0.000000e+00> : vector<256xf32>
      %22 = vector.multi_reduction <add>, %21, %cst_15 [0] : vector<8x256xf32> to vector<256xf32>
      %23 = vector.shape_cast %22 : vector<256xf32> to vector<1x256xf32>
      %24 = math.log %23 : vector<1x256xf32>
      %25 = vector.broadcast %24 : vector<1x256xf32> to vector<8x256xf32>
      %26 = arith.subf %20, %25 : vector<8x256xf32>
      %c0_16 = arith.constant 0 : index
      %c0_17 = arith.constant 0 : index
      %27 = vector.load %arg5[%c0_16, %c0_17] : memref<8x256xf32, #tpu.memory_space<vmem>>, vector<8x256xf32>
      tpu.vector_store %arg5[%c0_16, %c0_17], %26 {strides = array<i32>} : memref<8x256xf32, #tpu.memory_space<vmem>>, vector<8x256xf32>,
    } else {
    }
    return
  }
  func.func @transform_0(%arg0: i32, %arg1: i32) -> (i32, i32) {
    %c0_i32 = arith.constant 0 : i32
    return %arg0, %arg1 : i32, i32
  }
  func.func @transform_1(%arg0: i32, %arg1: i32) -> (i32, i32) {
    %c0_i32 = arith.constant 0 : i32
    %c0_i32_0 = arith.constant 0 : i32
    return %c0_i32, %arg1 : i32, i32
  }
  func.func @transform_2(%arg0: i32, %arg1: i32) -> (i32, i32) {
    %c0_i32 = arith.constant 0 : i32
    %c0_i32_0 = arith.constant 0 : i32
    %c0_i32_1 = arith.constant 0 : i32
    return %c0_i32, %c0_i32_0 : i32, i32
  }
  func.func @transform_3(%arg0: i32, %arg1: i32) -> (i32, i32) {
    %c0_i32 = arith.constant 0 : i32
    %c0_i32_0 = arith.constant 0 : i32
    return %c0_i32, %arg0 : i32, i32
  }
}

</mosaic_0001>

<llo_original>
// kernel: tpu_custom_call.1
$region0: #{tpu_custom_call.1}
  #allocation0 [shape = 'u32[]', space=smem, size = 0x4, offset = 0x4, fixed_abs, tag = 'smem constant byte address 0x4 - core index']
  #allocation1 [shape = 'u32[144,128]{1,0:T(1,128)}', space=vmem, size = 0x12000, scoped, tag = 'internal scratch']
  #allocation2 [shape = 'f32[8,256]{1,0:T(8,128)}', space=vmem, size = 0x2000, scoped, tag = 'scratch operand']
  %s0 = inlined_call_operand.hbm [shape: f32[256,512], index: 0, kind: input, shape index: {}]
  %s1 = inlined_call_operand.hbm [shape: bf16[8,512], index: 1, kind: input, shape index: {}]
  %s2 = inlined_call_operand.vmem [shape: f32[8,1], index: 2, kind: input, shape index: {}]
  %s3 = inlined_call_operand.hbm [shape: f32[8,256], index: 3, kind: output, shape index: {}]
  %s4 = sld [smem:[#allocation0]]
  $region38: #{tpu_custom_call.1} parent=0
    _
  %s6 = ssub.s32 1, %s4
  %s7 = scalar_select 0, %s6, %s4
  $region1: #{tpu_custom_call.1} parent=0
    #allocation3 [shape = 'u8[524288]{0}', space=vmem, size = 0x80000, scoped, tag = 'input window, operand 0, single buffered']
    #allocation4 [shape = 's32[1]{0}', space=sflag, size = 0x4, scoped, tag = 'scoped memory for tpu_custom_call.1']
    #allocation5 [shape = 's32[1]{0}', space=sflag, size = 0x4, scoped, tag = 'scoped memory for tpu_custom_call.1']
    #allocation6 [shape = 'u8[8192]{0}', space=vmem, size = 0x2000, scoped, tag = 'input window, operand 1, single buffered']
    #allocation7 [shape = 's32[1]{0}', space=sflag, size = 0x4, scoped, tag = 'scoped memory for tpu_custom_call.1']
    #allocation8 [shape = 'u8[8192]{0}', space=vmem, size = 0x2000, scoped, tag = 'output window, operand 0, single buffered']
    %8 = vsyncpa [#allocation4], 0
    %9 = vsyncpa [#allocation7], 0
    %10 = vsyncpa [#allocation5], 0
    // Predicated region
    $region2: #{tpu_custom_call.1} parent=1 // pred_check
      _
    $region3: #{tpu_custom_call.1} parent=1 // pred_check_branch
      %12 = sbr.rel (0) target = $region5
    $region4: #{tpu_custom_call.1} parent=1 // pred_region
      %s14 = ssub.s32 16384, 16384
      %15 = vsyncadd [#allocation4], %s14
      %s16 = sshll.u32 [#allocation3], 4
      %s17 = int_to_ptr.vmem [resolvable:$true] %s16
      %22 = dma.hbm_to_vmem [thread:$0]  %s0, 16384, %s17, [#allocation4], 512, 512, 32
    $region5: #{tpu_custom_call.1} parent=1 // pred_fallthru
      _
    // Predicated region
    $region6: #{tpu_custom_call.1} parent=1 // pred_check
      _
    $region7: #{tpu_custom_call.1} parent=1 // pred_check_branch
      %24 = sbr.rel (0) target = $region9
    $region8: #{tpu_custom_call.1} parent=1 // pred_region
      %s26 = ssub.s32 256, 256
      %27 = vsyncadd [#allocation7], %s26
      %s29 = sshll.u32 [#allocation6], 4
      %s30 = int_to_ptr.vmem [resolvable:$true] %s29
      %32 = dma.hbm_to_vmem [thread:$0]  %s1, 256, %s30, [#allocation7]
    $region9: #{tpu_custom_call.1} parent=1 // pred_fallthru
      _
    // Predicated region
    $region10: #{tpu_custom_call.1} parent=1 // pred_check
      _
    $region11: #{tpu_custom_call.1} parent=1 // pred_check_branch
      %34 = sbr.rel (0) target = $region13
    $region12: #{tpu_custom_call.1} parent=1 // pred_region
      _
    $region13: #{tpu_custom_call.1} parent=1 // pred_fallthru
      _
    // Predicated region
    $region14: #{tpu_custom_call.1} parent=1 // pred_check
      _
    $region15: #{tpu_custom_call.1} parent=1 // pred_check_branch
      %36 = sbr.rel (0) target = $region17
    $region16: #{tpu_custom_call.1} parent=1 // pred_region
      %37 = dma.done [#allocation4], 16384
    $region17: #{tpu_custom_call.1} parent=1 // pred_fallthru
      _
    // Predicated region
    $region18: #{tpu_custom_call.1} parent=1 // pred_check
      _
    $region19: #{tpu_custom_call.1} parent=1 // pred_check_branch
      %39 = sbr.rel (0) target = $region21
    $region20: #{tpu_custom_call.1} parent=1 // pred_region
      %40 = dma.done [#allocation7], 256
    $region21: #{tpu_custom_call.1} parent=1 // pred_fallthru
      _
    %p41 = scmp.eq.s32.totalorder 0, 0
    // Predicated region
    $region22: #{tpu_custom_call.1} parent=1 // pred_check
      %p42 = pneg %p41
    $region23: #{tpu_custom_call.1} parent=1 // pred_check_branch
      %44 = sbr.rel (%p42) target = $region25
    $region24: #{tpu_custom_call.1} parent=1 // pred_region
      %45 = vst [vmem:[#allocation2] sm:$0xff] 0.0
      %46 = vst [vmem:[#allocation2 + $0x8] sm:$0xff] 0.0
    $region25: #{tpu_custom_call.1} parent=1 // pred_fallthru
      _
    %v47 = vld [vmem:[#allocation3] sm:$0xff]
    %v48 = vld [vmem:[#allocation3 + $0x8] sm:$0xff]
    %v49 = vld [vmem:[#allocation3 + $0x10] sm:$0xff]
    %v50 = vld [vmem:[#allocation3 + $0x18] sm:$0xff]
    %v51 = vld [vmem:[#allocation3 + $0x20] sm:$0xff]
    %v52 = vld [vmem:[#allocation3 + $0x28] sm:$0xff]
    %v53 = vld [vmem:[#allocation3 + $0x30] sm:$0xff]
    %v54 = vld [vmem:[#allocation3 + $0x38] sm:$0xff]
    %v55 = vld [vmem:[#allocation3 + $0x40] sm:$0xff]
    %v56 = vld [vmem:[#allocation3 + $0x48] sm:$0xff]
    %v57 = vld [vmem:[#allocation3 + $0x50] sm:$0xff]
    %v58 = vld [vmem:[#allocation3 + $0x58] sm:$0xff]
    %v59 = vld [vmem:[#allocation3 + $0x60] sm:$0xff]
    %v60 = vld [vmem:[#allocation3 + $0x68] sm:$0xff]
    %v61 = vld [vmem:[#allocation3 + $0x70] sm:$0xff]
    %v62 = vld [vmem:[#allocation3 + $0x78] sm:$0xff]
    %v63 = vld [vmem:[#allocation3 + $0x80] sm:$0xff]
    %v64 = vld [vmem:[#allocation3 + $0x88] sm:$0xff]
    %v65 = vld [vmem:[#allocation3 + $0x90] sm:$0xff]
    %v66 = vld [vmem:[#allocation3 + $0x98] sm:$0xff]
    %v67 = vld [vmem:[#allocation3 + $0xa0] sm:$0xff]
    %v68 = vld [vmem:[#allocation3 + $0xa8] sm:$0xff]
    %v69 = vld [vmem:[#allocation3 + $0xb0] sm:$0xff]
    %v70 = vld [vmem:[#allocation3 + $0xb8] sm:$0xff]
    %v71 = vld [vmem:[#allocation3 + $0xc0] sm:$0xff]
    %v72 = vld [vmem:[#allocation3 + $0xc8] sm:$0xff]
    %v73 = vld [vmem:[#allocation3 + $0xd0] sm:$0xff]
    %v74 = vld [vmem:[#allocation3 + $0xd8] sm:$0xff]
    %v75 = vld [vmem:[#allocation3 + $0xe0] sm:$0xff]
    %v76 = vld [vmem:[#allocation3 + $0xe8] sm:$0xff]
    %v77 = vld [vmem:[#allocation3 + $0xf0] sm:$0xff]
    %v78 = vld [vmem:[#allocation3 + $0xf8] sm:$0xff]
    %v79 = vld [vmem:[#allocation3 + $0x100] sm:$0xff]
    %v80 = vld [vmem:[#allocation3 + $0x108] sm:$0xff]
    %v81 = vld [vmem:[#allocation3 + $0x110] sm:$0xff]
    %v82 = vld [vmem:[#allocation3 + $0x118] sm:$0xff]
    %v83 = vld [vmem:[#allocation3 + $0x120] sm:$0xff]
    %v84 = vld [vmem:[#allocation3 + $0x128] sm:$0xff]
    %v85 = vld [vmem:[#allocation3 + $0x130] sm:$0xff]
    %v86 = vld [vmem:[#allocation3 + $0x138] sm:$0xff]
    %v87 = vld [vmem:[#allocation3 + $0x140] sm:$0xff]
    %v88 = vld [vmem:[#allocation3 + $0x148] sm:$0xff]
    %v89 = vld [vmem:[#allocation3 + $0x150] sm:$0xff]
    %v90 = vld [vmem:[#allocation3 + $0x158] sm:$0xff]
    %v91 = vld [vmem:[#allocation3 + $0x160] sm:$0xff]
    %v92 = vld [vmem:[#allocation3 + $0x168] sm:$0xff]
    %v93 = vld [vmem:[#allocation3 + $0x170] sm:$0xff]
    %v94 = vld [vmem:[#allocation3 + $0x178] sm:$0xff]
    %v95 = vld [vmem:[#allocation3 + $0x180] sm:$0xff]
    %v96 = vld [vmem:[#allocation3 + $0x188] sm:$0xff]
    %v97 = vld [vmem:[#allocation3 + $0x190] sm:$0xff]
    %v98 = vld [vmem:[#allocation3 + $0x198] sm:$0xff]
    %v99 = vld [vmem:[#allocation3 + $0x1a0] sm:$0xff]
    %v100 = vld [vmem:[#allocation3 + $0x1a8] sm:$0xff]
    %v101 = vld [vmem:[#allocation3 + $0x1b0] sm:$0xff]
    %v102 = vld [vmem:[#allocation3 + $0x1b8] sm:$0xff]
    %v103 = vld [vmem:[#allocation3 + $0x1c0] sm:$0xff]
    %v104 = vld [vmem:[#allocation3 + $0x1c8] sm:$0xff]
    %v105 = vld [vmem:[#allocation3 + $0x1d0] sm:$0xff]
    %v106 = vld [vmem:[#allocation3 + $0x1d8] sm:$0xff]
    %v107 = vld [vmem:[#allocation3 + $0x1e0] sm:$0xff]
    %v108 = vld [vmem:[#allocation3 + $0x1e8] sm:$0xff]
    %v109 = vld [vmem:[#allocation3 + $0x1f0] sm:$0xff]
    %v110 = vld [vmem:[#allocation3 + $0x1f8] sm:$0xff]
    %v111 = vld [vmem:[#allocation3 + $0x200] sm:$0xff]
    %v112 = vld [vmem:[#allocation3 + $0x208] sm:$0xff]
    %v113 = vld [vmem:[#allocation3 + $0x210] sm:$0xff]
    %v114 = vld [vmem:[#allocation3 + $0x218] sm:$0xff]
    %v115 = vld [vmem:[#allocation3 + $0x220] sm:$0xff]
    %v116 = vld [vmem:[#allocation3 + $0x228] sm:$0xff]
    %v117 = vld [vmem:[#allocation3 + $0x230] sm:$0xff]
    %v118 = vld [vmem:[#allocation3 + $0x238] sm:$0xff]
    %v119 = vld [vmem:[#allocation3 + $0x240] sm:$0xff]
    %v120 = vld [vmem:[#allocation3 + $0x248] sm:$0xff]
    %v121 = vld [vmem:[#allocation3 + $0x250] sm:$0xff]
    %v122 = vld [vmem:[#allocation3 + $0x258] sm:$0xff]
    %v123 = vld [vmem:[#allocation3 + $0x260] sm:$0xff]
    %v124 = vld [vmem:[#allocation3 + $0x268] sm:$0xff]
    %v125 = vld [vmem:[#allocation3 + $0x270] sm:$0xff]
    %v126 = vld [vmem:[#allocation3 + $0x278] sm:$0xff]
    %v127 = vld [vmem:[#allocation3 + $0x280] sm:$0xff]
    %v128 = vld [vmem:[#allocation3 + $0x288] sm:$0xff]
    %v129 = vld [vmem:[#allocation3 + $0x290] sm:$0xff]
    %v130 = vld [vmem:[#allocation3 + $0x298] sm:$0xff]
    %v131 = vld [vmem:[#allocation3 + $0x2a0] sm:$0xff]
    %v132 = vld [vmem:[#allocation3 + $0x2a8] sm:$0xff]
    %v133 = vld [vmem:[#allocation3 + $0x2b0] sm:$0xff]
    %v134 = vld [vmem:[#allocation3 + $0x2b8] sm:$0xff]
    %v135 = vld [vmem:[#allocation3 + $0x2c0] sm:$0xff]
    %v136 = vld [vmem:[#allocation3 + $0x2c8] sm:$0xff]
    %v137 = vld [vmem:[#allocation3 + $0x2d0] sm:$0xff]
    %v138 = vld [vmem:[#allocation3 + $0x2d8] sm:$0xff]
    %v139 = vld [vmem:[#allocation3 + $0x2e0] sm:$0xff]
    %v140 = vld [vmem:[#allocation3 + $0x2e8] sm:$0xff]
    %v141 = vld [vmem:[#allocation3 + $0x2f0] sm:$0xff]
    %v142 = vld [vmem:[#allocation3 + $0x2f8] sm:$0xff]
    %v143 = vld [vmem:[#allocation3 + $0x300] sm:$0xff]
    %v144 = vld [vmem:[#allocation3 + $0x308] sm:$0xff]
    %v145 = vld [vmem:[#allocation3 + $0x310] sm:$0xff]
    %v146 = vld [vmem:[#allocation3 + $0x318] sm:$0xff]
    %v147 = vld [vmem:[#allocation3 + $0x320] sm:$0xff]
    %v148 = vld [vmem:[#allocation3 + $0x328] sm:$0xff]
    %v149 = vld [vmem:[#allocation3 + $0x330] sm:$0xff]
    %v150 = vld [vmem:[#allocation3 + $0x338] sm:$0xff]
    %v151 = vld [vmem:[#allocation3 + $0x340] sm:$0xff]
    %v152 = vld [vmem:[#allocation3 + $0x348] sm:$0xff]
    %v153 = vld [vmem:[#allocation3 + $0x350] sm:$0xff]
    %v154 = vld [vmem:[#allocation3 + $0x358] sm:$0xff]
    %v155 = vld [vmem:[#allocation3 + $0x360] sm:$0xff]
    %v156 = vld [vmem:[#allocation3 + $0x368] sm:$0xff]
    %v157 = vld [vmem:[#allocation3 + $0x370] sm:$0xff]
    %v158 = vld [vmem:[#allocation3 + $0x378] sm:$0xff]
    %v159 = vld [vmem:[#allocation3 + $0x380] sm:$0xff]
    %v160 = vld [vmem:[#allocation3 + $0x388] sm:$0xff]
    %v161 = vld [vmem:[#allocation3 + $0x390] sm:$0xff]
    %v162 = vld [vmem:[#allocation3 + $0x398] sm:$0xff]
    %v163 = vld [vmem:[#allocation3 + $0x3a0] sm:$0xff]
    %v164 = vld [vmem:[#allocation3 + $0x3a8] sm:$0xff]
    %v165 = vld [vmem:[#allocation3 + $0x3b0] sm:$0xff]
    %v166 = vld [vmem:[#allocation3 + $0x3b8] sm:$0xff]
    %v167 = vld [vmem:[#allocation3 + $0x3c0] sm:$0xff]
    %v168 = vld [vmem:[#allocation3 + $0x3c8] sm:$0xff]
    %v169 = vld [vmem:[#allocation3 + $0x3d0] sm:$0xff]
    %v170 = vld [vmem:[#allocation3 + $0x3d8] sm:$0xff]
    %v171 = vld [vmem:[#allocation3 + $0x3e0] sm:$0xff]
    %v172 = vld [vmem:[#allocation3 + $0x3e8] sm:$0xff]
    %v173 = vld [vmem:[#allocation3 + $0x3f0] sm:$0xff]
    %v174 = vld [vmem:[#allocation3 + $0x3f8] sm:$0xff]
    %v175 = vld [vmem:[#allocation6] sm:$0xff]
    %v176 = vld [vmem:[#allocation6 + $0x8] sm:$0xff]
    %v177 = vpack.c.bf16 %v51, %v47
    %v178 = vpack.c.bf16 %v52, %v48
    %v179 = vpack.c.bf16 %v53, %v49
    %v180 = vpack.c.bf16 %v54, %v50
    %v181 = vpack.c.bf16 %v59, %v55
    %v182 = vpack.c.bf16 %v60, %v56
    %v183 = vpack.c.bf16 %v61, %v57
    %v184 = vpack.c.bf16 %v62, %v58
    %v185 = vpack.c.bf16 %v67, %v63
    %v186 = vpack.c.bf16 %v68, %v64
    %v187 = vpack.c.bf16 %v69, %v65
    %v188 = vpack.c.bf16 %v70, %v66
    %v189 = vpack.c.bf16 %v75, %v71
    %v190 = vpack.c.bf16 %v76, %v72
    %v191 = vpack.c.bf16 %v77, %v73
    %v192 = vpack.c.bf16 %v78, %v74
    %v193 = vpack.c.bf16 %v83, %v79
    %v194 = vpack.c.bf16 %v84, %v80
    %v195 = vpack.c.bf16 %v85, %v81
    %v196 = vpack.c.bf16 %v86, %v82
    %v197 = vpack.c.bf16 %v91, %v87
    %v198 = vpack.c.bf16 %v92, %v88
    %v199 = vpack.c.bf16 %v93, %v89
    %v200 = vpack.c.bf16 %v94, %v90
    %v201 = vpack.c.bf16 %v99, %v95
    %v202 = vpack.c.bf16 %v100, %v96
    %v203 = vpack.c.bf16 %v101, %v97
    %v204 = vpack.c.bf16 %v102, %v98
    %v205 = vpack.c.bf16 %v107, %v103
    %v206 = vpack.c.bf16 %v108, %v104
    %v207 = vpack.c.bf16 %v109, %v105
    %v208 = vpack.c.bf16 %v110, %v106
    %v209 = vpack.c.bf16 %v115, %v111
    %v210 = vpack.c.bf16 %v116, %v112
    %v211 = vpack.c.bf16 %v117, %v113
    %v212 = vpack.c.bf16 %v118, %v114
    %v213 = vpack.c.bf16 %v123, %v119
    %v214 = vpack.c.bf16 %v124, %v120
    %v215 = vpack.c.bf16 %v125, %v121
    %v216 = vpack.c.bf16 %v126, %v122
    %v217 = vpack.c.bf16 %v131, %v127
    %v218 = vpack.c.bf16 %v132, %v128
    %v219 = vpack.c.bf16 %v133, %v129
    %v220 = vpack.c.bf16 %v134, %v130
    %v221 = vpack.c.bf16 %v139, %v135
    %v222 = vpack.c.bf16 %v140, %v136
    %v223 = vpack.c.bf16 %v141, %v137
    %v224 = vpack.c.bf16 %v142, %v138
    %v225 = vpack.c.bf16 %v147, %v143
    %v226 = vpack.c.bf16 %v148, %v144
    %v227 = vpack.c.bf16 %v149, %v145
    %v228 = vpack.c.bf16 %v150, %v146
    %v229 = vpack.c.bf16 %v155, %v151
    %v230 = vpack.c.bf16 %v156, %v152
    %v231 = vpack.c.bf16 %v157, %v153
    %v232 = vpack.c.bf16 %v158, %v154
    %v233 = vpack.c.bf16 %v163, %v159
    %v234 = vpack.c.bf16 %v164, %v160
    %v235 = vpack.c.bf16 %v165, %v161
    %v236 = vpack.c.bf16 %v166, %v162
    %v237 = vpack.c.bf16 %v171, %v167
    %v238 = vpack.c.bf16 %v172, %v168
    %v239 = vpack.c.bf16 %v173, %v169
    %v240 = vpack.c.bf16 %v174, %v170
    %v241 = vld [vmem:[#allocation2] sm:$0xff]
    %v242 = vld [vmem:[#allocation2 + $0x8] sm:$0xff]
    %v245 = vunpack.c.l.b16 %v175
    %v246 = vunpack.c.h.b16 %v175
    %v247 = vunpack.c.l.b16 %v176
    %v248 = vunpack.c.h.b16 %v176
    %v249 = vpack.c.b16 %v245, %v245
    %v250 = vpack.c.b16 %v246, %v246
    %v251 = vpack.c.b16 %v247, %v247
    %v252 = vpack.c.b16 %v248, %v248
    %257 = vmatprep.subr.bf16.mxu0 %v178
    %258 = vmatpush1.bf16.xpose.msra.mxu0 %v177
    %259 = vmatprep.subr.bf16.mxu0 %v182
    %260 = vmatpush1.bf16.xpose.msra.mxu0 %v181
    %261 = vmatprep.subr.bf16.mxu0 %v186
    %262 = vmatpush1.bf16.xpose.msra.mxu0 %v185
    %263 = vmatprep.subr.bf16.mxu0 %v190
    %264 = vmatpush1.bf16.xpose.msra.mxu0 %v189
    %265 = vmatprep.subr.bf16.mxu0 %v194
    %266 = vmatpush1.bf16.xpose.msra.mxu0 %v193
    %267 = vmatprep.subr.bf16.mxu0 %v198
    %268 = vmatpush1.bf16.xpose.msra.mxu0 %v197
    %269 = vmatprep.subr.bf16.mxu0 %v202
    %270 = vmatpush1.bf16.xpose.msra.mxu0 %v201
    %271 = vmatprep.subr.bf16.mxu0 %v206
    %272 = vmatpush1.bf16.xpose.msra.mxu0 %v205
    %273 = vmatprep.subr.bf16.mxu0 %v210
    %274 = vmatpush1.bf16.xpose.msra.mxu0 %v209
    %275 = vmatprep.subr.bf16.mxu0 %v214
    %276 = vmatpush1.bf16.xpose.msra.mxu0 %v213
    %277 = vmatprep.subr.bf16.mxu0 %v218
    %278 = vmatpush1.bf16.xpose.msra.mxu0 %v217
    %279 = vmatprep.subr.bf16.mxu0 %v222
    %280 = vmatpush1.bf16.xpose.msra.mxu0 %v221
    %281 = vmatprep.subr.bf16.mxu0 %v226
    %282 = vmatpush1.bf16.xpose.msra.mxu0 %v225
    %283 = vmatprep.subr.bf16.mxu0 %v230
    %284 = vmatpush1.bf16.xpose.msra.mxu0 %v229
    %285 = vmatprep.subr.bf16.mxu0 %v234
    %286 = vmatpush1.bf16.xpose.msra.mxu0 %v233
    %287 = vmatprep.subr.bf16.mxu0 %v238
    %288 = vmatpush1.bf16.xpose.msra.mxu0 %v237
    %289 = vmatprep.mubr.bf16.mxu0 %v250
    %290 = vmatmul.mubr.bf16.gmra.mrb[0].mxu0 %v249
    %v291 = vpop.f32.mrb[0].mxu0
    %v292 = vadd.f32 0.0, %v291
    %v293 = vpop.f32.mrb[0].mxu0
    %v294 = vadd.f32 0.0, %v293
    %v295 = vpop.f32.mrb[0].mxu0
    %v296 = vpop.f32.mrb[0].mxu0
    %297 = vdwg.mxu0
    %298 = vmatprep.subr.bf16.mxu0 %v180
    %299 = vmatpush1.bf16.xpose.msra.mxu0 %v179
    %300 = vmatprep.subr.bf16.mxu0 %v184
    %301 = vmatpush1.bf16.xpose.msra.mxu0 %v183
    %302 = vmatprep.subr.bf16.mxu0 %v188
    %303 = vmatpush1.bf16.xpose.msra.mxu0 %v187
    %304 = vmatprep.subr.bf16.mxu0 %v192
    %305 = vmatpush1.bf16.xpose.msra.mxu0 %v191
    %306 = vmatprep.subr.bf16.mxu0 %v196
    %307 = vmatpush1.bf16.xpose.msra.mxu0 %v195
    %308 = vmatprep.subr.bf16.mxu0 %v200
    %309 = vmatpush1.bf16.xpose.msra.mxu0 %v199
    %310 = vmatprep.subr.bf16.mxu0 %v204
    %311 = vmatpush1.bf16.xpose.msra.mxu0 %v203
    %312 = vmatprep.subr.bf16.mxu0 %v208
    %313 = vmatpush1.bf16.xpose.msra.mxu0 %v207
    %314 = vmatprep.subr.bf16.mxu0 %v212
    %315 = vmatpush1.bf16.xpose.msra.mxu0 %v211
    %316 = vmatprep.subr.bf16.mxu0 %v216
    %317 = vmatpush1.bf16.xpose.msra.mxu0 %v215
    %318 = vmatprep.subr.bf16.mxu0 %v220
    %319 = vmatpush1.bf16.xpose.msra.mxu0 %v219
    %320 = vmatprep.subr.bf16.mxu0 %v224
    %321 = vmatpush1.bf16.xpose.msra.mxu0 %v223
    %322 = vmatprep.subr.bf16.mxu0 %v228
    %323 = vmatpush1.bf16.xpose.msra.mxu0 %v227
    %324 = vmatprep.subr.bf16.mxu0 %v232
    %325 = vmatpush1.bf16.xpose.msra.mxu0 %v231
    %326 = vmatprep.subr.bf16.mxu0 %v236
    %327 = vmatpush1.bf16.xpose.msra.mxu0 %v235
    %328 = vmatprep.subr.bf16.mxu0 %v240
    %329 = vmatpush1.bf16.xpose.msra.mxu0 %v239
    %330 = vmatprep.mubr.bf16.mxu0 %v252
    %331 = vmatmul.mubr.bf16.gmra.mrb[0].mxu0 %v251
    %v332 = vpop.f32.mrb[0].mxu0
    %v333 = vadd.f32 %v292, %v332
    %v334 = vpop.f32.mrb[0].mxu0
    %v335 = vadd.f32 %v294, %v334
    %v336 = vpop.f32.mrb[0].mxu0
    %v337 = vpop.f32.mrb[0].mxu0
    %338 = vdwg.mxu0
    %v339 = vadd.f32 %v241, %v333
    %v340 = vadd.f32 %v242, %v335
    %341 = vst [vmem:[#allocation2] sm:$0xff] %v339
    %342 = vst [vmem:[#allocation2 + $0x8] sm:$0xff] %v340
    // Predicated region
    $region26: #{tpu_custom_call.1} parent=1 // pred_check
      %p343 = pneg %p41
    $region27: #{tpu_custom_call.1} parent=1 // pred_check_branch
      %345 = sbr.rel (%p343) target = $region29
    $region28: #{tpu_custom_call.1} parent=1 // pred_region
      %v346 = vld [vmem:[#allocation2] sm:$0xff]
      %v347 = vld [vmem:[#allocation2 + $0x8] sm:$0xff]
      %v348 = vld [vmem:[%s2] sm:$0xff]
      %350 = vset.pattern.permute.xlu0 0
      %351 = vperm.xlu0 %350, %v348
      %v352 = vpop.permute.xlu0 %351
      %v354 = vadd.f32 %v346, %v352
      %v355 = vadd.f32 %v347, %v352
      %v356 = vrot.slane %v354, 4
      %v357 = vmax.f32 %v354, %v356
      %v358 = vrot.slane %v357, 2
      %v359 = vmax.f32 %v357, %v358
      %v360 = vrot.slane %v359, 1
      %v361 = vmax.f32 %v359, %v360
      %v362 = vrot.slane %v355, 4
      %v363 = vmax.f32 %v355, %v362
      %v364 = vrot.slane %v363, 2
      %v365 = vmax.f32 %v363, %v364
      %v366 = vrot.slane %v365, 1
      %v367 = vmax.f32 %v365, %v366
      %v368 = vsub.f32 %v354, %v361
      %v369 = vsub.f32 %v355, %v367
      %v370 = vmul.f32 %v368, 1.442695
      %v371 = vpow.pop %v370
      %v372 = vmul.f32 %v369, 1.442695
      %v373 = vpow.pop %v372
      %v374 = vrot.slane %v371, 4
      %v375 = vadd.f32 %v371, %v374
      %v376 = vrot.slane %v375, 2
      %v377 = vadd.f32 %v375, %v376
      %v378 = vrot.slane %v377, 1
      %v379 = vadd.f32 %v377, %v378
      %v380 = vrot.slane %v373, 4
      %v381 = vadd.f32 %v373, %v380
      %v382 = vrot.slane %v381, 2
      %v383 = vadd.f32 %v381, %v382
      %v384 = vrot.slane %v383, 1
      %v385 = vadd.f32 %v383, %v384
      %v386 = vlog2.pop %v379
      %v387 = vmul.f32 %v386, 0.6931472
      %v388 = vlog2.pop %v385
      %v389 = vmul.f32 %v388, 0.6931472
      %v390 = vsub.f32 %v368, %v387
      %v391 = vsub.f32 %v369, %v389
      %392 = vst [vmem:[#allocation8] sm:$0xff] %v390
      %393 = vst [vmem:[#allocation8 + $0x8] sm:$0xff] %v391
    $region29: #{tpu_custom_call.1} parent=1 // pred_fallthru
      _
    // Predicated region
    $region30: #{tpu_custom_call.1} parent=1 // pred_check
      _
    $region31: #{tpu_custom_call.1} parent=1 // pred_check_branch
      %395 = sbr.rel (0) target = $region33
    $region32: #{tpu_custom_call.1} parent=1 // pred_region
      %s397 = ssub.s32 256, 256
      %398 = vsyncadd [#allocation5], %s397
      %s400 = sshll.u32 [#allocation8], 4
      %s401 = int_to_ptr.vmem [resolvable:$true] %s400
      %403 = dma.vmem_to_hbm [thread:$0]  %s401, 256, %s3, [#allocation5]
    $region33: #{tpu_custom_call.1} parent=1 // pred_fallthru
      _
    // Predicated region
    $region34: #{tpu_custom_call.1} parent=1 // pred_check
      _
    $region35: #{tpu_custom_call.1} parent=1 // pred_check_branch
      %405 = sbr.rel (0) target = $region37
    $region36: #{tpu_custom_call.1} parent=1 // pred_region
      %406 = dma.done [#allocation5], 256
    $region37: #{tpu_custom_call.1} parent=1 // pred_fallthru
      _
    %407 = vsyncpa [#allocation4], 1
    %408 = vsyncpa [#allocation7], 1
    %409 = vsyncpa [#allocation5], 1

</llo_original>
